<compile_context>
chip_gen: v6e
topology: v6e:2x2x1
jax: 0.10.0
libtpu: 0.0.40
codegen_flags: <defaults>
</compile_context>

<pallas_src>
import functools

import jax
import jax.numpy as jnp
from jax import lax
from jax.experimental import pallas as pl
from jax.experimental.pallas import tpu as pltpu


LN_EPS = 1e-5                       # PyTorch nn.LayerNorm default eps
INV_SQRT2 = 0.7071067811865476      # 1/sqrt(2)


def _ff_kernel(x_ref, g_ref, beta_ref, w1t_ref, b1_ref, w2_ref, b2_ref,
               o_ref, ln_sc, acc_sc):
    """Grid = (row_tiles, hidden_tiles); hidden axis is the reduction axis."""
    k = pl.program_id(1)

    # ---- once per row tile: LayerNorm (f32 stats), cache in weight dtype ----
    @pl.when(k == 0)
    def _init():
        x = x_ref[...].astype(jnp.float32)                     # (TM, dim)
        mu = jnp.mean(x, axis=-1, keepdims=True)
        xc = x - mu
        var = jnp.mean(xc * xc, axis=-1, keepdims=True)
        xn = xc * lax.rsqrt(var + LN_EPS)
        ln_sc[...] = (xn * g_ref[...] + beta_ref[...]).astype(ln_sc.dtype)
        acc_sc[...] = jnp.zeros_like(acc_sc)

    # ---- Linear 1: (tm, dim) x (tk, dim) contracting dim -> (tm, tk) ----
    h1 = lax.dot_general(
        ln_sc[...], w1t_ref[...],
        dimension_numbers=(((1,), (1,)), ((), ())),
        preferred_element_type=jnp.float32) + b1_ref[...]

    # ---- exact (erf) GELU, matching torch.nn.GELU() default numerics ----
    # TODO(synk): on v6e/v7x with small dim a tanh-approx GELU (EUP slot) or
    # bf16 evaluation would relieve VALU pressure; kept exact-erf for parity.
    h1 = 0.5 * h1 * (1.0 + lax.erf(h1 * INV_SQRT2))

    # ---- Linear 2: (tm, tk) x (tk, dim) -> accumulate into f32 scratch ----
    acc_sc[...] += jnp.dot(h1.astype(w2_ref.dtype), w2_ref[...],
                           preferred_element_type=jnp.float32)

    # ---- finalize: add output bias, cast, store ----
    @pl.when(k == pl.num_programs(1) - 1)
    def _fin():
        o_ref[...] = (acc_sc[...] + b2_ref[...]).astype(o_ref.dtype)


def _round_up(x, m):
    return (x + m - 1) // m * m


def _footprint(tm, tk, dim, xbytes, wbytes):
    """Approximate VMEM bytes for one tile configuration (double-buffered)."""
    return (
        2 * tm * dim * xbytes                      # x tiles
        + 2 * tm * dim * xbytes                    # out tiles
        + 2 * 2 * tk * dim * wbytes                # W1^T + W2 k-tiles
        + tm * dim * wbytes                        # LN cache scratch
        + tm * dim * 4                             # f32 accumulator scratch
        + 2 * tm * tk * 4                          # h1 + GELU temporaries
        + 2 * 8 * (3 * dim + max(tk, 128)) * 4     # gamma/beta/b1/b2 (padded)
    )


@functools.partial(jax.jit, static_argnames=("block_rows", "block_hidden"))
def feed_forward(x, gamma, beta, w1, b1, w2, b2, *,
                 block_rows=1024, block_hidden=512):
    """x: (B, N, dim). gamma/beta: (dim,), w1: (dim, hidden), b1: (hidden,),
    w2: (hidden, dim), b2: (dim,). Returns (B, N, dim)."""
    B, N, dim = x.shape
    hidden = w1.shape[1]
    rows = B * N

    xbytes = jnp.dtype(x.dtype).itemsize
    wbytes = jnp.dtype(w1.dtype).itemsize

    # Device-aware VMEM budget (v7x: 64 MiB, v5e/v6e: 128 MiB physical).
    try:
        vmem_cap = int(pltpu.get_tpu_info().vmem_capacity_bytes)
    except Exception:
        vmem_cap = 64 << 20                        # conservative fallback
    vmem_budget = int(vmem_cap * 0.8)              # headroom for compiler scratch

    try:
        kind = jax.devices()[0].device_kind.lower()
    except Exception:
        kind = ""
    multi_core = any(t in kind for t in ("v7", "v4", "v5p"))

    # ---- row tile: as large as VMEM allows (weights re-stream per row tile) --
    row_align = 16 if x.dtype == jnp.bfloat16 else 8
    tm = min(block_rows, _round_up(rows, row_align))
    if multi_core and rows > row_align:
        # ensure >=2 row tiles so both TensorCores get work on the parallel axis
        tm = min(tm, max(row_align, _round_up(pl.cdiv(rows, 2), row_align)))

    # ---- hidden tile ----
    if _footprint(tm, hidden, dim, xbytes, wbytes) <= vmem_budget:
        # Both weights fit: keep them resident (constant block index -> one DMA).
        hidden_p, tk = hidden, hidden
    else:
        hidden_p = _round_up(hidden, 128)
        bh = max(128, (min(block_hidden, hidden_p) // 128) * 128)
        tk = 128
        cand = bh
        while cand >= 128:                          # largest 128-mult divisor
            if hidden_p % cand == 0:
                tk = cand
                break
            cand -= 128
        while _footprint(tm, tk, dim, xbytes, wbytes) > vmem_budget and tm > row_align:
            tm = max(row_align, _round_up(tm // 2, row_align))
        while _footprint(tm, tk, dim, xbytes, wbytes) > vmem_budget and tk > 128:
            cand = tk - 128
            while cand >= 128 and hidden_p % cand != 0:
                cand -= 128
            if cand < 128:
                break
            tk = cand

    padded_rows = _round_up(rows, tm)

    x2d = x.reshape(rows, dim)
    if padded_rows != rows:
        x2d = jnp.pad(x2d, ((0, padded_rows - rows), (0, 0)))

    # Pre-transpose W1 so its k-tile is a contiguous (tk, dim) HBM slab.
    w1t = jnp.transpose(w1)                         # (hidden, dim)
    w2p, b1p = w2, b1
    if hidden_p != hidden:
        pad_h = hidden_p - hidden
        w1t = jnp.pad(w1t, ((0, pad_h), (0, 0)))
        w2p = jnp.pad(w2, ((0, pad_h), (0, 0)))
        b1p = jnp.pad(b1, (0, pad_h))

    # Parameter casts hoisted out of the sequential grid loop.
    gamma2d = gamma.astype(jnp.float32).reshape(1, dim)
    beta2d = beta.astype(jnp.float32).reshape(1, dim)
    b1_2d = b1p.astype(jnp.float32).reshape(1, hidden_p)
    b2_2d = b2.astype(jnp.float32).reshape(1, dim)

    grid = (padded_rows // tm, hidden_p // tk)

    need = _footprint(tm, tk, dim, xbytes, wbytes)
    vmem_limit = int(min(vmem_budget, max(need * 5 // 4 + (2 << 20), 16 << 20)))

    out2d = pl.pallas_call(
        _ff_kernel,
        out_shape=jax.ShapeDtypeStruct((padded_rows, dim), x.dtype),
        grid_spec=pltpu.PrefetchScalarGridSpec(
            num_scalar_prefetch=0,
            grid=grid,
            in_specs=[
                pl.BlockSpec((tm, dim), lambda i, k: (i, 0)),   # x rows tile
                pl.BlockSpec((1, dim), lambda i, k: (0, 0)),    # gamma (f32)
                pl.BlockSpec((1, dim), lambda i, k: (0, 0)),    # beta  (f32)
                pl.BlockSpec((tk, dim), lambda i, k: (k, 0)),   # W1^T k-slab
                pl.BlockSpec((1, tk), lambda i, k: (0, k)),     # b1 chunk
                pl.BlockSpec((tk, dim), lambda i, k: (k, 0)),   # W2 k-slab
                pl.BlockSpec((1, dim), lambda i, k: (0, 0)),    # b2
            ],
            out_specs=pl.BlockSpec((tm, dim), lambda i, k: (i, 0)),
            scratch_shapes=[
                pltpu.VMEM((tm, dim), w1.dtype),      # LN cache (weight dtype)
                pltpu.VMEM((tm, dim), jnp.float32),   # f32 output accumulator
            ],
        ),
        compiler_params=pltpu.CompilerParams(
            dimension_semantics=("parallel", "arbitrary"),
            vmem_limit_bytes=vmem_limit,
        ),
    )(x2d, gamma2d, beta2d, w1t, b1_2d, w2p, b2_2d)

    return out2d[:rows].reshape(B, N, dim)


def _reference(x, gamma, beta, w1, b1, w2, b2):
    xf = x.astype(jnp.float32)
    mu = jnp.mean(xf, axis=-1, keepdims=True)
    var = jnp.mean((xf - mu) ** 2, axis=-1, keepdims=True)
    xn = (xf - mu) / jnp.sqrt(var + LN_EPS)
    h = xn * gamma.astype(jnp.float32) + beta.astype(jnp.float32)
    h1 = h @ w1.astype(jnp.float32) + b1.astype(jnp.float32)
    h1 = 0.5 * h1 * (1.0 + lax.erf(h1 * INV_SQRT2))
    return (h1 @ w2.astype(jnp.float32) + b2.astype(jnp.float32)).astype(x.dtype)


if __name__ == "__main__":
    # Small shapes consistent with the module: tokens (B, N, dim)
    B, N, dim, hidden = 2, 8, 32, 64

    key = jax.random.PRNGKey(0)
    kx, kg, kb, kw1, kb1, kw2, kb2 = jax.random.split(key, 7)

    x = jax.random.normal(kx, (B, N, dim), dtype=jnp.float32)

    # Deterministic synthetic parameters (shapes match nn.LayerNorm/nn.Linear)
    gamma = jnp.ones((dim,), jnp.float32) + 0.01 * jax.random.normal(kg, (dim,))
    beta = 0.01 * jax.random.normal(kb, (dim,), dtype=jnp.float32)
    w1 = jax.random.normal(kw1, (dim, hidden), dtype=jnp.float32) * (1.0 / dim ** 0.5)
    b1 = 0.01 * jax.random.normal(kb1, (hidden,), dtype=jnp.float32)
    w2 = jax.random.normal(kw2, (hidden, dim), dtype=jnp.float32) * (1.0 / hidden ** 0.5)
    b2 = 0.01 * jax.random.normal(kb2, (dim,), dtype=jnp.float32)

    out = jax.block_until_ready(feed_forward(x, gamma, beta, w1, b1, w2, b2))

    ref = _reference(x, gamma, beta, w1, b1, w2, b2)
    assert out.shape == (B, N, dim)
    assert jnp.allclose(out, ref, atol=2e-4, rtol=2e-4), "mismatch vs reference"

    print("KERNEL_OK")
</pallas_src>

<mosaic_0001>
module attributes {stable_mosaic.version = 11 : i64} {
  func.func @_ff_kernel(%arg0: i32, %arg1: i32, %arg2: memref<16x32xf32, #tpu.memory_space<vmem>>, %arg3: memref<1x32xf32, #tpu.memory_space<vmem>>, %arg4: memref<1x32xf32, #tpu.memory_space<vmem>>, %arg5: memref<64x32xf32, #tpu.memory_space<vmem>>, %arg6: memref<1x64xf32, #tpu.memory_space<vmem>>, %arg7: memref<64x32xf32, #tpu.memory_space<vmem>>, %arg8: memref<1x32xf32, #tpu.memory_space<vmem>>, %arg9: memref<16x32xf32, #tpu.memory_space<vmem>>, %arg10: memref<16x32xf32, #tpu.memory_space<vmem>>, %arg11: memref<16x32xf32, #tpu.memory_space<vmem>>) attributes {dimension_semantics = [#tpu.dimension_semantics<parallel>, #tpu.dimension_semantics<arbitrary>], iteration_bounds = array<i64: 1, 1>, scalar_prefetch = 0 : i64, scratch_operands = 2 : i64, tpu.core_type = #tpu.core_type<tc>, window_params = [{transform_indices = @transform_0, window_bounds = array<i64: 16, 32>}, {pipeline_mode = #tpu.pipeline_mode<synchronous>, transform_indices = @transform_1, window_bounds = array<i64: 1, 32>}, {pipeline_mode = #tpu.pipeline_mode<synchronous>, transform_indices = @transform_2, window_bounds = array<i64: 1, 32>}, {transform_indices = @transform_3, window_bounds = array<i64: 64, 32>}, {transform_indices = @transform_4, window_bounds = array<i64: 1, 64>}, {transform_indices = @transform_5, window_bounds = array<i64: 64, 32>}, {pipeline_mode = #tpu.pipeline_mode<synchronous>, transform_indices = @transform_6, window_bounds = array<i64: 1, 32>}, {transform_indices = @transform_7, window_bounds = array<i64: 16, 32>}]} {
    %c0_i32 = arith.constant 0 : i32
    %0 = arith.cmpi eq, %arg1, %c0_i32 : i32
    %1 = arith.extui %0 : i1 to i32
    %c0_i32_0 = arith.constant 0 : i32
    %2 = arith.cmpi ne, %1, %c0_i32_0 : i32
    scf.if %2 {
      %c0_18 = arith.constant 0 : index
      %c0_19 = arith.constant 0 : index
      %25 = vector.load %arg2[%c0_18, %c0_19] : memref<16x32xf32, #tpu.memory_space<vmem>>, vector<16x32xf32>
      %cst_20 = arith.constant dense<0.000000e+00> : vector<16xf32>
      %26 = vector.multi_reduction <add>, %25, %cst_20 [1] : vector<16x32xf32> to vector<16xf32>
      %27 = vector.shape_cast %26 : vector<16xf32> to vector<16x1xf32>
      %cst_21 = arith.constant 3.200000e+01 : f32
      %28 = vector.broadcast %cst_21 : f32 to vector<16x1xf32>
      %29 = arith.divf %27, %28 : vector<16x1xf32>
      %30 = vector.broadcast %29 : vector<16x1xf32> to vector<16x32xf32>
      %31 = arith.subf %25, %30 : vector<16x32xf32>
      %32 = arith.mulf %31, %31 : vector<16x32xf32>
      %cst_22 = arith.constant dense<0.000000e+00> : vector<16xf32>
      %33 = vector.multi_reduction <add>, %32, %cst_22 [1] : vector<16x32xf32> to vector<16xf32>
      %34 = vector.shape_cast %33 : vector<16xf32> to vector<16x1xf32>
      %cst_23 = arith.constant 3.200000e+01 : f32
      %35 = vector.broadcast %cst_23 : f32 to vector<16x1xf32>
      %36 = arith.divf %34, %35 : vector<16x1xf32>
      %cst_24 = arith.constant 9.99999974E-6 : f32
      %37 = vector.broadcast %cst_24 : f32 to vector<16x1xf32>
      %38 = arith.addf %36, %37 : vector<16x1xf32>
      %39 = math.rsqrt %38 : vector<16x1xf32>
      %40 = vector.broadcast %39 : vector<16x1xf32> to vector<16x32xf32>
      %41 = arith.mulf %31, %40 : vector<16x32xf32>
      %c0_25 = arith.constant 0 : index
      %c0_26 = arith.constant 0 : index
      %42 = vector.load %arg3[%c0_25, %c0_26] : memref<1x32xf32, #tpu.memory_space<vmem>>, vector<1x32xf32>
      %43 = vector.broadcast %42 : vector<1x32xf32> to vector<16x32xf32>
      %44 = arith.mulf %41, %43 : vector<16x32xf32>
      %c0_27 = arith.constant 0 : index
      %c0_28 = arith.constant 0 : index
      %45 = vector.load %arg4[%c0_27, %c0_28] : memref<1x32xf32, #tpu.memory_space<vmem>>, vector<1x32xf32>
      %46 = vector.broadcast %45 : vector<1x32xf32> to vector<16x32xf32>
      %47 = arith.addf %44, %46 : vector<16x32xf32>
      %c0_29 = arith.constant 0 : index
      %c0_30 = arith.constant 0 : index
      %48 = vector.load %arg10[%c0_29, %c0_30] : memref<16x32xf32, #tpu.memory_space<vmem>>, vector<16x32xf32>
      tpu.vector_store %arg10[%c0_29, %c0_30], %47 {strides = array<i32>} : memref<16x32xf32, #tpu.memory_space<vmem>>, vector<16x32xf32>,
      %cst_31 = arith.constant 0.000000e+00 : f32
      %49 = vector.broadcast %cst_31 : f32 to vector<16x32xf32>
      %c0_32 = arith.constant 0 : index
      %c0_33 = arith.constant 0 : index
      %50 = vector.load %arg11[%c0_32, %c0_33] : memref<16x32xf32, #tpu.memory_space<vmem>>, vector<16x32xf32>
      tpu.vector_store %arg11[%c0_32, %c0_33], %49 {strides = array<i32>} : memref<16x32xf32, #tpu.memory_space<vmem>>, vector<16x32xf32>,
    } else {
    }
    %c0 = arith.constant 0 : index
    %c0_1 = arith.constant 0 : index
    %3 = vector.load %arg10[%c0, %c0_1] : memref<16x32xf32, #tpu.memory_space<vmem>>, vector<16x32xf32>
    %c0_2 = arith.constant 0 : index
    %c0_3 = arith.constant 0 : index
    %4 = vector.load %arg5[%c0_2, %c0_3] : memref<64x32xf32, #tpu.memory_space<vmem>>, vector<64x32xf32>
    %cst = arith.constant dense<0.000000e+00> : vector<16x64xf32>
    %5 = tpu.matmul %3, %4, %cst {dimension_numbers = #tpu.dot_dimension_numbers<[1], [1], [0], [0], [0, 0, 1, 0], [], []>} : vector<16x32xf32>, vector<64x32xf32>, vector<16x64xf32> -> vector<16x64xf32>
    %c0_4 = arith.constant 0 : index
    %c0_5 = arith.constant 0 : index
    %6 = vector.load %arg6[%c0_4, %c0_5] : memref<1x64xf32, #tpu.memory_space<vmem>>, vector<1x64xf32>
    %7 = vector.broadcast %6 : vector<1x64xf32> to vector<16x64xf32>
    %8 = arith.addf %5, %7 : vector<16x64xf32>
    %cst_6 = arith.constant 5.000000e-01 : f32
    %9 = vector.broadcast %cst_6 : f32 to vector<16x64xf32>
    %10 = arith.mulf %9, %8 : vector<16x64xf32>
    %cst_7 = arith.constant 0.707106769 : f32
    %11 = vector.broadcast %cst_7 : f32 to vector<16x64xf32>
    %12 = arith.mulf %8, %11 : vector<16x64xf32>
    %13 = math.erf %12 : vector<16x64xf32>
    %cst_8 = arith.constant 1.000000e+00 : f32
    %14 = vector.broadcast %cst_8 : f32 to vector<16x64xf32>
    %15 = arith.addf %14, %13 : vector<16x64xf32>
    %16 = arith.mulf %10, %15 : vector<16x64xf32>
    %c0_9 = arith.constant 0 : index
    %c0_10 = arith.constant 0 : index
    %17 = vector.load %arg11[%c0_9, %c0_10] : memref<16x32xf32, #tpu.memory_space<vmem>>, vector<16x32xf32>
    %c0_11 = arith.constant 0 : index
    %c0_12 = arith.constant 0 : index
    %18 = vector.load %arg7[%c0_11, %c0_12] : memref<64x32xf32, #tpu.memory_space<vmem>>, vector<64x32xf32>
    %cst_13 = arith.constant dense<0.000000e+00> : vector<16x32xf32>
    %19 = tpu.matmul %16, %18, %cst_13 {dimension_numbers = #tpu.dot_dimension_numbers<[1], [0], [0], [1], [0, 0, 1, 1], [], []>} : vector<16x64xf32>, vector<64x32xf32>, vector<16x32xf32> -> vector<16x32xf32>
    %20 = arith.addf %17, %19 : vector<16x32xf32>
    %c0_14 = arith.constant 0 : index
    %c0_15 = arith.constant 0 : index
    %21 = vector.load %arg11[%c0_14, %c0_15] : memref<16x32xf32, #tpu.memory_space<vmem>>, vector<16x32xf32>
    tpu.vector_store %arg11[%c0_14, %c0_15], %20 {strides = array<i32>} : memref<16x32xf32, #tpu.memory_space<vmem>>, vector<16x32xf32>,
    %c0_i32_16 = arith.constant 0 : i32
    %22 = arith.cmpi eq, %arg1, %c0_i32_16 : i32
    %23 = arith.extui %22 : i1 to i32
    %c0_i32_17 = arith.constant 0 : i32
    %24 = arith.cmpi ne, %23, %c0_i32_17 : i32
    scf.if %24 {
      %c0_18 = arith.constant 0 : index
      %c0_19 = arith.constant 0 : index
      %25 = vector.load %arg11[%c0_18, %c0_19] : memref<16x32xf32, #tpu.memory_space<vmem>>, vector<16x32xf32>
      %c0_20 = arith.constant 0 : index
      %c0_21 = arith.constant 0 : index
      %26 = vector.load %arg8[%c0_20, %c0_21] : memref<1x32xf32, #tpu.memory_space<vmem>>, vector<1x32xf32>
      %27 = vector.broadcast %26 : vector<1x32xf32> to vector<16x32xf32>
      %28 = arith.addf %25, %27 : vector<16x32xf32>
      %c0_22 = arith.constant 0 : index
      %c0_23 = arith.constant 0 : index
      %29 = vector.load %arg9[%c0_22, %c0_23] : memref<16x32xf32, #tpu.memory_space<vmem>>, vector<16x32xf32>
      tpu.vector_store %arg9[%c0_22, %c0_23], %28 {strides = array<i32>} : memref<16x32xf32, #tpu.memory_space<vmem>>, vector<16x32xf32>,
    } else {
    }
    return
  }
  func.func @transform_0(%arg0: i32, %arg1: i32) -> (i32, i32) {
    %c0_i32 = arith.constant 0 : i32
    %c0_i32_0 = arith.constant 0 : i32
    return %arg0, %c0_i32 : i32, i32
  }
  func.func @transform_1(%arg0: i32, %arg1: i32) -> (i32, i32) {
    %c0_i32 = arith.constant 0 : i32
    %c0_i32_0 = arith.constant 0 : i32
    %c0_i32_1 = arith.constant 0 : i32
    return %c0_i32, %c0_i32_0 : i32, i32
  }
  func.func @transform_2(%arg0: i32, %arg1: i32) -> (i32, i32) {
    %c0_i32 = arith.constant 0 : i32
    %c0_i32_0 = arith.constant 0 : i32
    %c0_i32_1 = arith.constant 0 : i32
    return %c0_i32, %c0_i32_0 : i32, i32
  }
  func.func @transform_3(%arg0: i32, %arg1: i32) -> (i32, i32) {
    %c0_i32 = arith.constant 0 : i32
    %c0_i32_0 = arith.constant 0 : i32
    return %arg1, %c0_i32 : i32, i32
  }
  func.func @transform_4(%arg0: i32, %arg1: i32) -> (i32, i32) {
    %c0_i32 = arith.constant 0 : i32
    %c0_i32_0 = arith.constant 0 : i32
    return %c0_i32, %arg1 : i32, i32
  }
  func.func @transform_5(%arg0: i32, %arg1: i32) -> (i32, i32) {
    %c0_i32 = arith.constant 0 : i32
    %c0_i32_0 = arith.constant 0 : i32
    return %arg1, %c0_i32 : i32, i32
  }
  func.func @transform_6(%arg0: i32, %arg1: i32) -> (i32, i32) {
    %c0_i32 = arith.constant 0 : i32
    %c0_i32_0 = arith.constant 0 : i32
    %c0_i32_1 = arith.constant 0 : i32
    return %c0_i32, %c0_i32_0 : i32, i32
  }
  func.func @transform_7(%arg0: i32, %arg1: i32) -> (i32, i32) {
    %c0_i32 = arith.constant 0 : i32
    %c0_i32_0 = arith.constant 0 : i32
    return %arg0, %c0_i32 : i32, i32
  }
}

</mosaic_0001>

<llo_original>
// kernel: feed_forward.1
$region0: #{feed_forward.1}
  #allocation0 [shape = 'u32[]', space=smem, size = 0x4, offset = 0x4, fixed_abs, tag = 'smem constant byte address 0x4 - core index']
  #allocation1 [shape = 'u32[144,128]{1,0:T(1,128)}', space=vmem, size = 0x12000, scoped, tag = 'internal scratch']
  #allocation2 [shape = 'f32[16,32]{1,0:T(8,128)}', space=vmem, size = 0x2000, scoped, tag = 'scratch operand']
  #allocation3 [shape = 'f32[16,32]{1,0:T(8,128)}', space=vmem, size = 0x2000, scoped, tag = 'scratch operand']
  %s0 = inlined_call_operand.vmem [shape: f32[16,32], index: 0, kind: input, shape index: {}]
  %s1 = inlined_call_operand.vmem [shape: f32[1,32], index: 1, kind: input, shape index: {}]
  %s2 = inlined_call_operand.vmem [shape: f32[1,32], index: 2, kind: input, shape index: {}]
  %s3 = inlined_call_operand.vmem [shape: f32[64,32], index: 3, kind: input, shape index: {}]
  %s4 = inlined_call_operand.vmem [shape: f32[1,64], index: 4, kind: input, shape index: {}]
  %s5 = inlined_call_operand.vmem [shape: f32[64,32], index: 5, kind: input, shape index: {}]
  %s6 = inlined_call_operand.vmem [shape: f32[1,32], index: 6, kind: input, shape index: {}]
  %s7 = inlined_call_operand.hbm [shape: f32[16,32], index: 7, kind: output, shape index: {}]
  %s8 = sld [smem:[#allocation0]]
  $region46: #{feed_forward.1} parent=0
    _
  %s10 = ssub.s32 1, %s8
  %s11 = scalar_select 0, %s10, %s8
  $region1: #{feed_forward.1} parent=0
    #allocation4 [shape = 'u8[8192]{0}', space=vmem, size = 0x2000, scoped, tag = 'output window, operand 0, single buffered']
    #allocation5 [shape = 's32[1]{0}', space=sflag, size = 0x4, scoped, tag = 'scoped memory for feed_forward.1']
    %12 = vsyncpa [#allocation5], 0
    // Predicated region
    $region2: #{feed_forward.1} parent=1 // pred_check
      _
    $region3: #{feed_forward.1} parent=1 // pred_check_branch
      %14 = sbr.rel (0) target = $region5
    $region4: #{feed_forward.1} parent=1 // pred_region
      _
    $region5: #{feed_forward.1} parent=1 // pred_fallthru
      _
    // Predicated region
    $region6: #{feed_forward.1} parent=1 // pred_check
      _
    $region7: #{feed_forward.1} parent=1 // pred_check_branch
      %16 = sbr.rel (0) target = $region9
    $region8: #{feed_forward.1} parent=1 // pred_region
      _
    $region9: #{feed_forward.1} parent=1 // pred_fallthru
      _
    // Predicated region
    $region10: #{feed_forward.1} parent=1 // pred_check
      _
    $region11: #{feed_forward.1} parent=1 // pred_check_branch
      %18 = sbr.rel (0) target = $region13
    $region12: #{feed_forward.1} parent=1 // pred_region
      _
    $region13: #{feed_forward.1} parent=1 // pred_fallthru
      _
    // Predicated region
    $region14: #{feed_forward.1} parent=1 // pred_check
      _
    $region15: #{feed_forward.1} parent=1 // pred_check_branch
      %20 = sbr.rel (0) target = $region17
    $region16: #{feed_forward.1} parent=1 // pred_region
      _
    $region17: #{feed_forward.1} parent=1 // pred_fallthru
      _
    // Predicated region
    $region18: #{feed_forward.1} parent=1 // pred_check
      _
    $region19: #{feed_forward.1} parent=1 // pred_check_branch
      %22 = sbr.rel (0) target = $region21
    $region20: #{feed_forward.1} parent=1 // pred_region
      _
    $region21: #{feed_forward.1} parent=1 // pred_fallthru
      _
    // Predicated region
    $region22: #{feed_forward.1} parent=1 // pred_check
      _
    $region23: #{feed_forward.1} parent=1 // pred_check_branch
      %24 = sbr.rel (0) target = $region25
    $region24: #{feed_forward.1} parent=1 // pred_region
      _
    $region25: #{feed_forward.1} parent=1 // pred_fallthru
      _
    // Predicated region
    $region26: #{feed_forward.1} parent=1 // pred_check
      _
    $region27: #{feed_forward.1} parent=1 // pred_check_branch
      %26 = sbr.rel (0) target = $region29
    $region28: #{feed_forward.1} parent=1 // pred_region
      _
    $region29: #{feed_forward.1} parent=1 // pred_fallthru
      _
    %p27 = scmp.eq.s32.totalorder 0, 0
    // Predicated region
    $region30: #{feed_forward.1} parent=1 // pred_check
      %p28 = pneg %p27
    $region31: #{feed_forward.1} parent=1 // pred_check_branch
      %30 = sbr.rel (%p28) target = $region33
    $region32: #{feed_forward.1} parent=1 // pred_region
      %v31 = vld [vmem:[%s0] sm:$0xff]
      %v32 = vld [vmem:[%s0 + $0x8] sm:$0xff]
      %vm33 = vcmask 261120
      %v34 = vsel %vm33, %v31, 0.0
      %35 = vadd.xlane.f32.xlu0 %v34
      %v36 = vpop.xlane.xlu0 %35
      %v37 = vsel %vm33, %v32, 0.0
      %38 = vadd.xlane.f32.xlu0 %v37
      %v39 = vpop.xlane.xlu0 %38
      %v40 = vrcp.pop 32.0
      %v41 = vmul.f32 %v36, %v40
      %v42 = vmul.f32 %v39, %v40
      %v43 = vsub.f32 %v31, %v41
      %v44 = vsub.f32 %v32, %v42
      %v45 = vmul.f32 %v43, %v43
      %v46 = vmul.f32 %v44, %v44
      %v47 = vsel %vm33, %v45, 0.0
      %48 = vadd.xlane.f32.xlu0 %v47
      %v49 = vpop.xlane.xlu0 %48
      %v50 = vsel %vm33, %v46, 0.0
      %51 = vadd.xlane.f32.xlu0 %v50
      %v52 = vpop.xlane.xlu0 %51
      %v53 = vmul.f32 %v49, %v40
      %v54 = vmul.f32 %v52, %v40
      %v55 = vadd.f32 %v53, 1e-05
      %v56 = vadd.f32 %v54, 1e-05
      %v57 = vrsqrt.pop %v55
      %v58 = vrsqrt.pop %v56
      %v59 = vmul.f32 %v43, %v57
      %v60 = vmul.f32 %v44, %v58
      %v61 = vld [vmem:[%s1] sm:$0x1]
      %v63 = vlaneseq
      %v64 = vshrl.u32 %v63, 7
      %v65 = vsub.s32 0, %v64
      %v66 = vrot.slane %v61, %v65
      %v68 = vmul.f32 %v59, %v66
      %v69 = vmul.f32 %v60, %v66
      %v70 = vld [vmem:[%s2] sm:$0x1]
      %v72 = vlaneseq
      %v73 = vshrl.u32 %v72, 7
      %v74 = vsub.s32 0, %v73
      %v75 = vrot.slane %v70, %v74
      %v77 = vadd.f32 %v68, %v75
      %v78 = vadd.f32 %v69, %v75
      %79 = vst.msk [vmem:[#allocation2] sm:$0xff] %vm33, %v77
      %80 = vst.msk [vmem:[#allocation2 + $0x8] sm:$0xff] %vm33, %v78
      %81 = vst.msk [vmem:[#allocation3] sm:$0xff] %vm33, 0.0
      %82 = vst.msk [vmem:[#allocation3 + $0x8] sm:$0xff] %vm33, 0.0
    $region33: #{feed_forward.1} parent=1 // pred_fallthru
      _
    %v83 = vld [vmem:[#allocation2] sm:$0xff]
    %v84 = vld [vmem:[#allocation2 + $0x8] sm:$0xff]
    %v85 = vld [vmem:[%s3] sm:$0xff]
    %v86 = vld [vmem:[%s3 + $0x8] sm:$0xff]
    %v87 = vld [vmem:[%s3 + $0x10] sm:$0xff]
    %v88 = vld [vmem:[%s3 + $0x18] sm:$0xff]
    %v89 = vld [vmem:[%s3 + $0x20] sm:$0xff]
    %v90 = vld [vmem:[%s3 + $0x28] sm:$0xff]
    %v91 = vld [vmem:[%s3 + $0x30] sm:$0xff]
    %v92 = vld [vmem:[%s3 + $0x38] sm:$0xff]
    %v93 = vld [vmem:[%s4] sm:$0x1]
    %v95 = vlaneseq
    %v96 = vshrl.u32 %v95, 7
    %v97 = vsub.s32 0, %v96
    %v98 = vrot.slane %v93, %v97
    %vm100 = vcmask 261120
    %v102 = vsel %vm100, %v83, 0
    %v105 = vsel %vm100, %v84, 0
    %v108 = vsel %vm100, %v85, 0
    %v111 = vsel %vm100, %v86, 0
    %v114 = vsel %vm100, %v87, 0
    %v117 = vsel %vm100, %v88, 0
    %v120 = vsel %vm100, %v89, 0
    %v123 = vsel %vm100, %v90, 0
    %v126 = vsel %vm100, %v91, 0
    %v129 = vsel %vm100, %v92, 0
    %131 = vmatprep.subr.mxu0 0.0
    %132 = vmatpush1.xpose.msra.mxu0 0.0
    %133 = vmatprep.subr.mxu0 0.0
    %134 = vmatpush1.xpose.msra.mxu0 0.0
    %135 = vmatprep.subr.mxu0 0.0
    %136 = vmatpush1.xpose.msra.mxu0 0.0
    %137 = vmatprep.subr.mxu0 0.0
    %138 = vmatpush1.xpose.msra.mxu0 0.0
    %139 = vmatprep.subr.mxu0 0.0
    %140 = vmatpush1.xpose.msra.mxu0 0.0
    %141 = vmatprep.subr.mxu0 0.0
    %142 = vmatpush1.xpose.msra.mxu0 0.0
    %143 = vmatprep.subr.mxu0 0.0
    %144 = vmatpush1.xpose.msra.mxu0 0.0
    %145 = vmatprep.subr.mxu0 0.0
    %146 = vmatpush1.xpose.msra.mxu0 0.0
    %147 = vmatprep.subr.mxu0 0.0
    %148 = vmatpush1.xpose.msra.mxu0 %v129
    %149 = vmatprep.subr.mxu0 0.0
    %150 = vmatpush1.xpose.msra.mxu0 %v126
    %151 = vmatprep.subr.mxu0 0.0
    %152 = vmatpush1.xpose.msra.mxu0 %v123
    %153 = vmatprep.subr.mxu0 0.0
    %154 = vmatpush1.xpose.msra.mxu0 %v120
    %155 = vmatprep.subr.mxu0 0.0
    %156 = vmatpush1.xpose.msra.mxu0 %v117
    %157 = vmatprep.subr.mxu0 0.0
    %158 = vmatpush1.xpose.msra.mxu0 %v114
    %159 = vmatprep.subr.mxu0 0.0
    %160 = vmatpush1.xpose.msra.mxu0 %v111
    %161 = vmatprep.subr.mxu0 0.0
    %162 = vmatpush1.xpose.msra.mxu0 %v108
    %163 = vmatprep.subr.mxu0 0.0
    %164 = vmatpush2.xpose.msra.mxu0 0.0
    %165 = vmatprep.subr.mxu0 0.0
    %166 = vmatpush2.xpose.msra.mxu0 0.0
    %167 = vmatprep.subr.mxu0 0.0
    %168 = vmatpush2.xpose.msra.mxu0 0.0
    %169 = vmatprep.subr.mxu0 0.0
    %170 = vmatpush2.xpose.msra.mxu0 0.0
    %171 = vmatprep.subr.mxu0 0.0
    %172 = vmatpush2.xpose.msra.mxu0 0.0
    %173 = vmatprep.subr.mxu0 0.0
    %174 = vmatpush2.xpose.msra.mxu0 0.0
    %175 = vmatprep.subr.mxu0 0.0
    %176 = vmatpush2.xpose.msra.mxu0 0.0
    %177 = vmatprep.subr.mxu0 0.0
    %178 = vmatpush2.xpose.msra.mxu0 0.0
    %179 = vmatprep.subr.mxu0 0.0
    %180 = vmatpush2.xpose.msra.mxu0 0.0
    %181 = vmatprep.subr.mxu0 0.0
    %182 = vmatpush2.xpose.msra.mxu0 0.0
    %183 = vmatprep.subr.mxu0 0.0
    %184 = vmatpush2.xpose.msra.mxu0 0.0
    %185 = vmatprep.subr.mxu0 0.0
    %186 = vmatpush2.xpose.msra.mxu0 0.0
    %187 = vmatprep.subr.mxu0 0.0
    %188 = vmatpush2.xpose.msra.mxu0 0.0
    %189 = vmatprep.subr.mxu0 0.0
    %190 = vmatpush2.xpose.msra.mxu0 0.0
    %191 = vmatprep.subr.mxu0 0.0
    %192 = vmatpush2.xpose.msra.mxu0 0.0
    %193 = vmatprep.subr.mxu0 0.0
    %194 = vmatpush2.xpose.msra.mxu0 0.0
    %195 = vmatprep.mubr.f32.mxu0 0.0
    %196 = vmatmul.mubr.f32.gmra.mxu0 %v102
    %v197 = vpop.f32.mrf.mxu0
    %v198 = vadd.f32 %v98, %v197
    %v199 = vpop.f32.mrf.mxu0
    %200 = vmatprep.mubr.f32.mxu0 0.0
    %201 = vmatmul.mubr.f32.gmra.mxu0 %v105
    %v202 = vpop.f32.mrf.mxu0
    %v203 = vadd.f32 %v98, %v202
    %v204 = vpop.f32.mrf.mxu0
    %205 = vdwg.mxu0
    %v206 = vmul.f32 %v198, 0.5
    %v207 = vmul.f32 %v203, 0.5
    %v208 = vmul.f32 %v198, 0.70710677
    %v209 = vmul.f32 %v203, 0.70710677
    %v210 = verf.f32.pop %v208
    %v211 = verf.f32.pop %v209
    %v212 = vadd.f32 %v210, 1.0
    %v213 = vadd.f32 %v211, 1.0
    %v214 = vmul.f32 %v206, %v212
    %v215 = vmul.f32 %v207, %v213
    %v216 = vld [vmem:[#allocation3] sm:$0xff]
    %v217 = vld [vmem:[#allocation3 + $0x8] sm:$0xff]
    %v218 = vld [vmem:[%s5] sm:$0xff]
    %v219 = vld [vmem:[%s5 + $0x8] sm:$0xff]
    %v220 = vld [vmem:[%s5 + $0x10] sm:$0xff]
    %v221 = vld [vmem:[%s5 + $0x18] sm:$0xff]
    %v222 = vld [vmem:[%s5 + $0x20] sm:$0xff]
    %v223 = vld [vmem:[%s5 + $0x28] sm:$0xff]
    %v224 = vld [vmem:[%s5 + $0x30] sm:$0xff]
    %v225 = vld [vmem:[%s5 + $0x38] sm:$0xff]
    %vm226 = vcmask 523264
    %v228 = vsel %vm226, %v214, 0
    %v231 = vsel %vm226, %v215, 0
    %233 = vmatprep.subr.mxu0 0.0
    %234 = vmatpush1.msra.mxu0 0.0
    %235 = vmatprep.subr.mxu0 0.0
    %236 = vmatpush1.msra.mxu0 0.0
    %237 = vmatprep.subr.mxu0 0.0
    %238 = vmatpush1.msra.mxu0 0.0
    %239 = vmatprep.subr.mxu0 0.0
    %240 = vmatpush1.msra.mxu0 0.0
    %241 = vmatprep.subr.mxu0 0.0
    %242 = vmatpush1.msra.mxu0 0.0
    %243 = vmatprep.subr.mxu0 0.0
    %244 = vmatpush1.msra.mxu0 0.0
    %245 = vmatprep.subr.mxu0 0.0
    %246 = vmatpush1.msra.mxu0 0.0
    %247 = vmatprep.subr.mxu0 0.0
    %248 = vmatpush1.msra.mxu0 0.0
    %249 = vmatprep.subr.mxu0 0.0
    %250 = vmatpush1.msra.mxu0 %v225
    %251 = vmatprep.subr.mxu0 0.0
    %252 = vmatpush1.msra.mxu0 %v224
    %253 = vmatprep.subr.mxu0 0.0
    %254 = vmatpush1.msra.mxu0 %v223
    %255 = vmatprep.subr.mxu0 0.0
    %256 = vmatpush1.msra.mxu0 %v222
    %257 = vmatprep.subr.mxu0 0.0
    %258 = vmatpush1.msra.mxu0 %v221
    %259 = vmatprep.subr.mxu0 0.0
    %260 = vmatpush1.msra.mxu0 %v220
    %261 = vmatprep.subr.mxu0 0.0
    %262 = vmatpush1.msra.mxu0 %v219
    %263 = vmatprep.subr.mxu0 0.0
    %264 = vmatpush1.msra.mxu0 %v218
    %265 = vmatprep.subr.mxu0 0.0
    %266 = vmatpush2.msra.mxu0 0.0
    %267 = vmatprep.subr.mxu0 0.0
    %268 = vmatpush2.msra.mxu0 0.0
    %269 = vmatprep.subr.mxu0 0.0
    %270 = vmatpush2.msra.mxu0 0.0
    %271 = vmatprep.subr.mxu0 0.0
    %272 = vmatpush2.msra.mxu0 0.0
    %273 = vmatprep.subr.mxu0 0.0
    %274 = vmatpush2.msra.mxu0 0.0
    %275 = vmatprep.subr.mxu0 0.0
    %276 = vmatpush2.msra.mxu0 0.0
    %277 = vmatprep.subr.mxu0 0.0
    %278 = vmatpush2.msra.mxu0 0.0
    %279 = vmatprep.subr.mxu0 0.0
    %280 = vmatpush2.msra.mxu0 0.0
    %281 = vmatprep.subr.mxu0 0.0
    %282 = vmatpush2.msra.mxu0 0.0
    %283 = vmatprep.subr.mxu0 0.0
    %284 = vmatpush2.msra.mxu0 0.0
    %285 = vmatprep.subr.mxu0 0.0
    %286 = vmatpush2.msra.mxu0 0.0
    %287 = vmatprep.subr.mxu0 0.0
    %288 = vmatpush2.msra.mxu0 0.0
    %289 = vmatprep.subr.mxu0 0.0
    %290 = vmatpush2.msra.mxu0 0.0
    %291 = vmatprep.subr.mxu0 0.0
    %292 = vmatpush2.msra.mxu0 0.0
    %293 = vmatprep.subr.mxu0 0.0
    %294 = vmatpush2.msra.mxu0 0.0
    %295 = vmatprep.subr.mxu0 0.0
    %296 = vmatpush2.msra.mxu0 0.0
    %297 = vmatprep.mubr.f32.mxu0 0.0
    %298 = vmatmul.mubr.f32.gmra.mxu0 %v228
    %v299 = vpop.f32.mrf.mxu0
    %v300 = vadd.f32 0.0, %v299
    %v301 = vpop.f32.mrf.mxu0
    %302 = vmatprep.mubr.f32.mxu0 0.0
    %303 = vmatmul.mubr.f32.gmra.mxu0 %v231
    %v304 = vpop.f32.mrf.mxu0
    %v305 = vadd.f32 0.0, %v304
    %v306 = vpop.f32.mrf.mxu0
    %307 = vdwg.mxu0
    %v308 = vadd.f32 %v216, %v300
    %v309 = vadd.f32 %v217, %v305
    %310 = vst.msk [vmem:[#allocation3] sm:$0xff] %vm100, %v308
    %311 = vst.msk [vmem:[#allocation3 + $0x8] sm:$0xff] %vm100, %v309
    // Predicated region
    $region34: #{feed_forward.1} parent=1 // pred_check
      %p312 = pneg %p27
    $region35: #{feed_forward.1} parent=1 // pred_check_branch
      %314 = sbr.rel (%p312) target = $region37
    $region36: #{feed_forward.1} parent=1 // pred_region
      %v315 = vld [vmem:[#allocation3] sm:$0xff]
      %v316 = vld [vmem:[#allocation3 + $0x8] sm:$0xff]
      %v317 = vld [vmem:[%s6] sm:$0x1]
      %v319 = vlaneseq
      %v320 = vshrl.u32 %v319, 7
      %v321 = vsub.s32 0, %v320
      %v322 = vrot.slane %v317, %v321
      %v324 = vadd.f32 %v315, %v322
      %v325 = vadd.f32 %v316, %v322
      %326 = vst.msk [vmem:[#allocation4] sm:$0xff] %vm100, %v324
      %327 = vst.msk [vmem:[#allocation4 + $0x8] sm:$0xff] %vm100, %v325
    $region37: #{feed_forward.1} parent=1 // pred_fallthru
      _
    // Predicated region
    $region38: #{feed_forward.1} parent=1 // pred_check
      _
    $region39: #{feed_forward.1} parent=1 // pred_check_branch
      %329 = sbr.rel (0) target = $region41
    $region40: #{feed_forward.1} parent=1 // pred_region
      %s331 = ssub.s32 256, 256
      %332 = vsyncadd [#allocation5], %s331
      %s333 = sshll.u32 [#allocation4], 4
      %s334 = int_to_ptr.vmem [resolvable:$true] %s333
      %339 = dma.vmem_to_hbm [thread:$0]  %s334, 256, %s7, [#allocation5], 128, 128, 8
    $region41: #{feed_forward.1} parent=1 // pred_fallthru
      _
    // Predicated region
    $region42: #{feed_forward.1} parent=1 // pred_check
      _
    $region43: #{feed_forward.1} parent=1 // pred_check_branch
      %341 = sbr.rel (0) target = $region45
    $region44: #{feed_forward.1} parent=1 // pred_region
      %342 = dma.done [#allocation5], 256
    $region45: #{feed_forward.1} parent=1 // pred_fallthru
      _
    %343 = vsyncpa [#allocation5], 1

</llo_original>
